<compile_context>
chip_gen: v7x
topology: tpu7x:2x2x1
jax: 0.10.0
libtpu: 0.0.40
codegen_flags: <defaults>
</compile_context>

<pallas_src>
import jax
import jax.numpy as jnp
from jax.experimental import pallas as pl
from jax.experimental.pallas import tpu as pltpu


def _round_up(n, m):
    return ((n + m - 1) // m) * m


def _round_feat(d, gran):
    # v6e/v7x MXUs are 256-wide: round feature dims that exceed 128 up to 256
    # multiples; dims <= 128 stay at 128 (lane width) to avoid 8x padding.
    if gran > 128 and d <= 128:
        return 128
    return _round_up(d, gran)


def _pick_hk(H, target):
    """Largest power-of-two multiple of 128 that divides H and is <= target."""
    hk = 128
    cand = 256
    while cand <= target and H % cand == 0:
        hk = cand
        cand *= 2
    return hk


def _tpu_config():
    """Per-TPU-generation tuning knobs."""
    kind = ""
    try:
        kind = jax.devices()[0].device_kind.lower()
    except Exception:
        pass
    vmem_phys = None
    try:
        vmem_phys = int(pltpu.get_tpu_info().vmem_capacity_bytes)
    except Exception:
        pass

    # Conservative defaults (v7x-like: 64 MiB per-TC VMEM, 2 TensorCores).
    cfg = dict(vmem_limit=56 << 20, vmem_budget=44 << 20, feat_round=256,
               batch_tile=256, bf16_epilogue=True, num_cores=2)
    if "v5" in kind:
        # v5e: 128 MiB VMEM (16 MiB scoped default), 4x128x128 MXU, no bf16 VPU.
        cfg.update(vmem_limit=100 << 20, vmem_budget=88 << 20, feat_round=128,
                   batch_tile=256, bf16_epilogue=False, num_cores=1)
    elif "v6" in kind:
        # v6e: 128 MiB VMEM, 2x256x256 MXU, bf16 VPU -> bigger tiles/limit.
        cfg.update(vmem_limit=112 << 20, vmem_budget=96 << 20, feat_round=256,
                   batch_tile=512, bf16_epilogue=True, num_cores=1)
    elif "v7" in kind or "7x" in kind:
        # v7x: 64 MiB VMEM per TC, 2 TCs.
        cfg.update(vmem_limit=56 << 20, vmem_budget=44 << 20, feat_round=256,
                   batch_tile=256, bf16_epilogue=True, num_cores=2)
    if vmem_phys is not None:
        cfg["vmem_limit"] = min(cfg["vmem_limit"], int(vmem_phys * 7 // 8))
        cfg["vmem_budget"] = min(cfg["vmem_budget"], int(vmem_phys * 11 // 16))
    return cfg


# --------------------------------------------------------------------------
# Kernels
# --------------------------------------------------------------------------
def _mlp_kernel_resident(x_ref, w1_ref, b1_ref, w2_ref, b2_ref, w3_ref, b3_ref,
                         o_ref):
    """All weights resident in VMEM. Dropout == identity (eval mode)."""
    ep = b1_ref.dtype  # epilogue dtype: f32 on v5e, bf16 on v6e/v7x

    h = jnp.dot(x_ref[...], w1_ref[...], preferred_element_type=jnp.float32)
    h = jnp.maximum(h.astype(ep) + b1_ref[...], 0)

    h = jnp.dot(h.astype(w2_ref.dtype), w2_ref[...],
                preferred_element_type=jnp.float32)
    h = jnp.maximum(h.astype(ep) + b2_ref[...], 0)

    out = jnp.dot(h.astype(w3_ref.dtype), w3_ref[...],
                  preferred_element_type=jnp.float32)
    o_ref[...] = (out + b3_ref[...]).astype(o_ref.dtype)


def _mlp_kernel_stream_w2(x_ref, w1_ref, b1_ref, w2_ref, b2_ref, w3_ref, b3_ref,
                          o_ref, h1_ref, acc_ref):
    """Layer-2's (H, H) weight streamed over the hidden (reduction) grid axis."""
    k = pl.program_id(1)
    ep = b1_ref.dtype
    hk = w2_ref.shape[0]  # hidden-dim slice width of the streamed w2 block

    @pl.when(k == 0)
    def _():
        # Layer 1 once per batch tile; stash activation in VMEM scratch.
        h = jnp.dot(x_ref[...], w1_ref[...], preferred_element_type=jnp.float32)
        h1_ref[...] = jnp.maximum(h.astype(ep) + b1_ref[...], 0).astype(h1_ref.dtype)
        acc_ref[...] = jnp.zeros_like(acc_ref)

    # Layer 2 partial product for this hidden-dim slice.
    off = pl.multiple_of(k * hk, 128)
    acc_ref[...] += jnp.dot(h1_ref[:, pl.ds(off, hk)], w2_ref[...],
                            preferred_element_type=jnp.float32)

    @pl.when(k == pl.num_programs(1) - 1)
    def _():
        h2 = jnp.maximum(acc_ref[...].astype(ep) + b2_ref[...], 0)
        out = jnp.dot(h2.astype(w3_ref.dtype), w3_ref[...],
                      preferred_element_type=jnp.float32)
        o_ref[...] = (out + b3_ref[...]).astype(o_ref.dtype)


# --------------------------------------------------------------------------
# Wrapper
# --------------------------------------------------------------------------
def prepare_params(params, *, matmul_dtype=jnp.bfloat16, cfg=None,
                   epilogue_dtype=None, feat_round=None):
    """One-time parameter prep (hoisted out of the hot path): transpose
    PyTorch (out, in) weights to (in, out), pad feature dims to MXU-friendly
    granularity, cast to the matmul dtype. Call once, reuse across forwards."""
    cfg = cfg or _tpu_config()
    feat_round = feat_round or cfg["feat_round"]
    if epilogue_dtype is None:
        epilogue_dtype = jnp.bfloat16 if cfg["bf16_epilogue"] else jnp.float32

    i_dim = params["w1"].shape[1]
    h_dim = params["w1"].shape[0]
    o_dim = params["w3"].shape[0]
    I = _round_feat(i_dim, feat_round)
    H = _round_feat(h_dim, feat_round)
    O = _round_feat(o_dim, feat_round)

    def pad2(a, rows, cols):
        return jnp.pad(a, ((0, rows - a.shape[0]), (0, cols - a.shape[1])))

    def pad1(a, cols):
        return jnp.pad(a, (0, cols - a.shape[0])).reshape(1, cols)

    return {
        "w1": pad2(params["w1"].T, I, H).astype(matmul_dtype),
        "w2": pad2(params["w2"].T, H, H).astype(matmul_dtype),
        "w3": pad2(params["w3"].T, H, O).astype(matmul_dtype),
        # Inter-layer biases live in the epilogue dtype (bf16 on v6e/v7x);
        # the final bias is added to the f32 accumulator.
        "b1": pad1(params["b1"], H).astype(epilogue_dtype),
        "b2": pad1(params["b2"], H).astype(epilogue_dtype),
        "b3": pad1(params["b3"], O).astype(jnp.float32),
        "dims": (i_dim, h_dim, o_dim),
        "padded": (I, H, O),
        "matmul_dtype": matmul_dtype,
    }


def mlp_forward(x, prep, *, cfg=None, batch_tile=None, out_dtype=jnp.float32,
                vmem_limit_bytes=None, vmem_budget_bytes=None,
                force_stream_w2=False, hk_target=512):
    """x: (B, i_dim) float32. prep: output of prepare_params (reused)."""
    cfg = cfg or _tpu_config()
    batch_tile = batch_tile or cfg["batch_tile"]
    vmem_limit_bytes = vmem_limit_bytes or cfg["vmem_limit"]
    vmem_budget_bytes = vmem_budget_bytes or cfg["vmem_budget"]

    B, i_dim = x.shape
    pi, ph, po = prep["dims"]
    assert i_dim == pi, (i_dim, pi)
    I, H, O = prep["padded"]
    mm_dtype = prep["matmul_dtype"]
    wsize = jnp.dtype(mm_dtype).itemsize
    osize = jnp.dtype(out_dtype).itemsize

    # Batch tiling: tiny batches pad only to the bf16 sublane granularity (16),
    # larger batches use the per-generation tile (multiple of 128).
    if B < 128:
        bt = _round_up(B, 16)
    else:
        bt = min(batch_tile, _round_up(B, 128))
    Bp = _round_up(B, bt)
    # On 2-TC parts ensure the 'parallel' axis has >= 2 steps so both cores run.
    if cfg["num_cores"] >= 2 and Bp // bt < 2 and bt >= 256:
        bt //= 2
        Bp = _round_up(B, bt)
    steps = Bp // bt

    xp = jnp.pad(x, ((0, Bp - B), (0, I - i_dim))).astype(mm_dtype)

    # Does the whole-resident layer-2 weight fit the per-generation VMEM budget?
    resident_bytes = (
        wsize * (I * H + H * H + H * O)   # single-buffered weights
        + 2 * bt * I * wsize              # double-buffered x tiles
        + 2 * bt * O * osize              # double-buffered out tiles
        + 2 * bt * H * 4)                 # in-kernel f32 intermediates
    stream_w2 = force_stream_w2 or resident_bytes > vmem_budget_bytes

    flops = 2 * Bp * (I * H + H * H + H * O)
    bytes_accessed = (Bp * I * wsize + (I * H + H * H + H * O) * wsize
                      + (2 * H + O) * 4 + Bp * O * osize)
    cost = pl.CostEstimate(flops=flops, transcendentals=0,
                           bytes_accessed=bytes_accessed)

    def resident(shape, rank):
        # Constant index_map -> block resident across the grid; single-buffered
        # so invariant data does not pay 2x VMEM.
        imap = (lambda i: (0,) * len(shape)) if rank == 1 else \
               (lambda i, k: (0,) * len(shape))
        return pl.BlockSpec(shape, imap, pipeline_mode=pl.Buffered(1))

    if not stream_w2:
        grid_spec = pltpu.PrefetchScalarGridSpec(
            num_scalar_prefetch=0,
            grid=(steps,),
            in_specs=[
                pl.BlockSpec((bt, I), lambda i: (i, 0)),   # x tile
                resident((I, H), 1), resident((1, H), 1),  # w1, b1
                resident((H, H), 1), resident((1, H), 1),  # w2, b2
                resident((H, O), 1), resident((1, O), 1),  # w3, b3
            ],
            out_specs=pl.BlockSpec((bt, O), lambda i: (i, 0)),
        )
        kernel = _mlp_kernel_resident
        dim_sem = ("parallel",)
    else:
        hk = _pick_hk(H, hk_target)
        ksteps = H // hk
        grid_spec = pltpu.PrefetchScalarGridSpec(
            num_scalar_prefetch=0,
            grid=(steps, ksteps),
            in_specs=[
                pl.BlockSpec((bt, I), lambda i, k: (i, 0)),   # x tile
                resident((I, H), 2), resident((1, H), 2),     # w1, b1
                pl.BlockSpec((hk, H), lambda i, k: (k, 0)),   # streamed w2
                resident((1, H), 2),                          # b2
                resident((H, O), 2), resident((1, O), 2),     # w3, b3
            ],
            out_specs=pl.BlockSpec((bt, O), lambda i, k: (i, 0)),
            scratch_shapes=[pltpu.VMEM((bt, H), mm_dtype),      # layer-1 act
                            pltpu.VMEM((bt, H), jnp.float32)],  # layer-2 acc
        )
        kernel = _mlp_kernel_stream_w2
        dim_sem = ("parallel", "arbitrary")

    out_padded = pl.pallas_call(
        kernel,
        out_shape=jax.ShapeDtypeStruct((Bp, O), out_dtype),
        grid_spec=grid_spec,
        compiler_params=pltpu.CompilerParams(
            dimension_semantics=dim_sem,
            vmem_limit_bytes=vmem_limit_bytes,
        ),
        cost_estimate=cost,
    )(xp, prep["w1"], prep["b1"], prep["w2"], prep["b2"],
      prep["w3"], prep["b3"])

    return out_padded[:B, :po]


# --------------------------------------------------------------------------
# Reference + test harness
# --------------------------------------------------------------------------
def init_params(key, i_dim, h_dim, o_dim):
    """Deterministic init matching nn.Linear shapes (weight: (out, in))."""
    ks = jax.random.split(key, 6)

    def lin(kw, kb, fan_in, fan_out):
        bound = 1.0 / jnp.sqrt(fan_in)
        w = jax.random.uniform(kw, (fan_out, fan_in), jnp.float32, -bound, bound)
        b = jax.random.uniform(kb, (fan_out,), jnp.float32, -bound, bound)
        return w, b

    w1, b1 = lin(ks[0], ks[1], i_dim, h_dim)
    w2, b2 = lin(ks[2], ks[3], h_dim, h_dim)
    w3, b3 = lin(ks[4], ks[5], h_dim, o_dim)
    return {"w1": w1, "b1": b1, "w2": w2, "b2": b2, "w3": w3, "b3": b3}


def mlp_reference(x, p):
    h = jnp.maximum(x @ p["w1"].T + p["b1"], 0.0)
    h = jnp.maximum(h @ p["w2"].T + p["b2"], 0.0)
    return h @ p["w3"].T + p["b3"]


if __name__ == "__main__":
    key = jax.random.PRNGKey(0)
    k1, k2, k3, k4 = jax.random.split(key, 4)

    # --- Test 1: small shapes, whole-resident-weights path (eval-mode MLP) ---
    i_dim, h_dim, o_dim, d_rate = 32, 32, 16, 0.1   # d_rate: identity in eval
    B = 8
    x = jax.random.normal(k1, (B, i_dim), jnp.float32)
    params = init_params(k2, i_dim, h_dim, o_dim)
    prep = prepare_params(params)                   # one-time prep (hoisted)
    out = mlp_forward(x, prep)
    jax.block_until_ready(out)
    ref = mlp_reference(x, params)
    assert out.shape == (B, o_dim)
    # bf16 matmul operands (f32 MXU accumulation) -> relaxed tolerance.
    assert jnp.allclose(out, ref, atol=5e-2, rtol=5e-2), (
        float(jnp.max(jnp.abs(out - ref))))

    # --- Test 2: force the layer-2 hidden-dim-streamed (re-tiled w2) path ---
    i2, h2, o2, B2 = 48, 300, 24, 40
    x2 = jax.random.normal(k3, (B2, i2), jnp.float32)
    params2 = init_params(k4, i2, h2, o2)
    prep2 = prepare_params(params2)
    out2 = mlp_forward(x2, prep2, force_stream_w2=True, hk_target=128)
    jax.block_until_ready(out2)
    ref2 = mlp_reference(x2, params2)
    assert out2.shape == (B2, o2)
    assert jnp.allclose(out2, ref2, atol=5e-2, rtol=5e-2), (
        float(jnp.max(jnp.abs(out2 - ref2))))

    print("KERNEL_OK")
</pallas_src>

<mosaic_0001>
module attributes {stable_mosaic.version = 11 : i64} {
  func.func @_mlp_kernel_resident(%arg0: i32, %arg1: memref<16x128xbf16, #tpu.memory_space<vmem>>, %arg2: memref<128x128xbf16, #tpu.memory_space<vmem>>, %arg3: memref<1x128xbf16, #tpu.memory_space<vmem>>, %arg4: memref<128x128xbf16, #tpu.memory_space<vmem>>, %arg5: memref<1x128xbf16, #tpu.memory_space<vmem>>, %arg6: memref<128x128xbf16, #tpu.memory_space<vmem>>, %arg7: memref<1x128xf32, #tpu.memory_space<vmem>>, %arg8: memref<16x128xf32, #tpu.memory_space<vmem>>) attributes {dimension_semantics = [#tpu.dimension_semantics<parallel>], iteration_bounds = array<i64: 1>, scalar_prefetch = 0 : i64, scratch_operands = 0 : i64, tpu.core_type = #tpu.core_type<tc>, window_params = [{transform_indices = @transform_0, window_bounds = array<i64: 16, 128>}, {pipeline_mode = #tpu.pipeline_mode<synchronous>, transform_indices = @transform_1, window_bounds = array<i64: 128, 128>}, {pipeline_mode = #tpu.pipeline_mode<synchronous>, transform_indices = @transform_2, window_bounds = array<i64: 1, 128>}, {pipeline_mode = #tpu.pipeline_mode<synchronous>, transform_indices = @transform_3, window_bounds = array<i64: 128, 128>}, {pipeline_mode = #tpu.pipeline_mode<synchronous>, transform_indices = @transform_4, window_bounds = array<i64: 1, 128>}, {pipeline_mode = #tpu.pipeline_mode<synchronous>, transform_indices = @transform_5, window_bounds = array<i64: 128, 128>}, {pipeline_mode = #tpu.pipeline_mode<synchronous>, transform_indices = @transform_6, window_bounds = array<i64: 1, 128>}, {transform_indices = @transform_7, window_bounds = array<i64: 16, 128>}]} {
    %c0 = arith.constant 0 : index
    %c0_0 = arith.constant 0 : index
    %0 = vector.load %arg1[%c0, %c0_0] : memref<16x128xbf16, #tpu.memory_space<vmem>>, vector<16x128xbf16>
    %c0_1 = arith.constant 0 : index
    %c0_2 = arith.constant 0 : index
    %1 = vector.load %arg2[%c0_1, %c0_2] : memref<128x128xbf16, #tpu.memory_space<vmem>>, vector<128x128xbf16>
    %cst = arith.constant dense<0.000000e+00> : vector<16x128xf32>
    %2 = tpu.matmul %0, %1, %cst {dimension_numbers = #tpu.dot_dimension_numbers<[1], [0], [0], [1], [0, 0, 1, 1], [], []>} : vector<16x128xbf16>, vector<128x128xbf16>, vector<16x128xf32> -> vector<16x128xf32>
    %3 = arith.truncf %2 : vector<16x128xf32> to vector<16x128xbf16>
    %c0_3 = arith.constant 0 : index
    %c0_4 = arith.constant 0 : index
    %4 = vector.load %arg3[%c0_3, %c0_4] : memref<1x128xbf16, #tpu.memory_space<vmem>>, vector<1x128xbf16>
    %5 = vector.broadcast %4 : vector<1x128xbf16> to vector<16x128xbf16>
    %6 = arith.addf %3, %5 : vector<16x128xbf16>
    %cst_5 = arith.constant 0.000000e+00 : bf16
    %7 = vector.broadcast %cst_5 : bf16 to vector<16x128xbf16>
    %8 = arith.maximumf %6, %7 : vector<16x128xbf16>
    %c0_6 = arith.constant 0 : index
    %c0_7 = arith.constant 0 : index
    %9 = vector.load %arg4[%c0_6, %c0_7] : memref<128x128xbf16, #tpu.memory_space<vmem>>, vector<128x128xbf16>
    %cst_8 = arith.constant dense<0.000000e+00> : vector<16x128xf32>
    %10 = tpu.matmul %8, %9, %cst_8 {dimension_numbers = #tpu.dot_dimension_numbers<[1], [0], [0], [1], [0, 0, 1, 1], [], []>} : vector<16x128xbf16>, vector<128x128xbf16>, vector<16x128xf32> -> vector<16x128xf32>
    %11 = arith.truncf %10 : vector<16x128xf32> to vector<16x128xbf16>
    %c0_9 = arith.constant 0 : index
    %c0_10 = arith.constant 0 : index
    %12 = vector.load %arg5[%c0_9, %c0_10] : memref<1x128xbf16, #tpu.memory_space<vmem>>, vector<1x128xbf16>
    %13 = vector.broadcast %12 : vector<1x128xbf16> to vector<16x128xbf16>
    %14 = arith.addf %11, %13 : vector<16x128xbf16>
    %cst_11 = arith.constant 0.000000e+00 : bf16
    %15 = vector.broadcast %cst_11 : bf16 to vector<16x128xbf16>
    %16 = arith.maximumf %14, %15 : vector<16x128xbf16>
    %c0_12 = arith.constant 0 : index
    %c0_13 = arith.constant 0 : index
    %17 = vector.load %arg6[%c0_12, %c0_13] : memref<128x128xbf16, #tpu.memory_space<vmem>>, vector<128x128xbf16>
    %cst_14 = arith.constant dense<0.000000e+00> : vector<16x128xf32>
    %18 = tpu.matmul %16, %17, %cst_14 {dimension_numbers = #tpu.dot_dimension_numbers<[1], [0], [0], [1], [0, 0, 1, 1], [], []>} : vector<16x128xbf16>, vector<128x128xbf16>, vector<16x128xf32> -> vector<16x128xf32>
    %c0_15 = arith.constant 0 : index
    %c0_16 = arith.constant 0 : index
    %19 = vector.load %arg7[%c0_15, %c0_16] : memref<1x128xf32, #tpu.memory_space<vmem>>, vector<1x128xf32>
    %20 = vector.broadcast %19 : vector<1x128xf32> to vector<16x128xf32>
    %21 = arith.addf %18, %20 : vector<16x128xf32>
    %c0_17 = arith.constant 0 : index
    %c0_18 = arith.constant 0 : index
    %22 = vector.load %arg8[%c0_17, %c0_18] : memref<16x128xf32, #tpu.memory_space<vmem>>, vector<16x128xf32>
    tpu.vector_store %arg8[%c0_17, %c0_18], %21 {strides = array<i32>} : memref<16x128xf32, #tpu.memory_space<vmem>>, vector<16x128xf32>,
    return
  }
  func.func @transform_0(%arg0: i32) -> (i32, i32) {
    %c0_i32 = arith.constant 0 : i32
    %c0_i32_0 = arith.constant 0 : i32
    return %arg0, %c0_i32 : i32, i32
  }
  func.func @transform_1(%arg0: i32) -> (i32, i32) {
    %c0_i32 = arith.constant 0 : i32
    %c0_i32_0 = arith.constant 0 : i32
    %c0_i32_1 = arith.constant 0 : i32
    return %c0_i32, %c0_i32_0 : i32, i32
  }
  func.func @transform_2(%arg0: i32) -> (i32, i32) {
    %c0_i32 = arith.constant 0 : i32
    %c0_i32_0 = arith.constant 0 : i32
    %c0_i32_1 = arith.constant 0 : i32
    return %c0_i32, %c0_i32_0 : i32, i32
  }
  func.func @transform_3(%arg0: i32) -> (i32, i32) {
    %c0_i32 = arith.constant 0 : i32
    %c0_i32_0 = arith.constant 0 : i32
    %c0_i32_1 = arith.constant 0 : i32
    return %c0_i32, %c0_i32_0 : i32, i32
  }
  func.func @transform_4(%arg0: i32) -> (i32, i32) {
    %c0_i32 = arith.constant 0 : i32
    %c0_i32_0 = arith.constant 0 : i32
    %c0_i32_1 = arith.constant 0 : i32
    return %c0_i32, %c0_i32_0 : i32, i32
  }
  func.func @transform_5(%arg0: i32) -> (i32, i32) {
    %c0_i32 = arith.constant 0 : i32
    %c0_i32_0 = arith.constant 0 : i32
    %c0_i32_1 = arith.constant 0 : i32
    return %c0_i32, %c0_i32_0 : i32, i32
  }
  func.func @transform_6(%arg0: i32) -> (i32, i32) {
    %c0_i32 = arith.constant 0 : i32
    %c0_i32_0 = arith.constant 0 : i32
    %c0_i32_1 = arith.constant 0 : i32
    return %c0_i32, %c0_i32_0 : i32, i32
  }
  func.func @transform_7(%arg0: i32) -> (i32, i32) {
    %c0_i32 = arith.constant 0 : i32
    %c0_i32_0 = arith.constant 0 : i32
    return %arg0, %c0_i32 : i32, i32
  }
}

</mosaic_0001>

<llo_original>
// kernel: tpu_custom_call.1
$region0: #{tpu_custom_call.1}
  #allocation0 [shape = 'u32[]', space=smem, size = 0x4, offset = 0x4, fixed_abs, tag = 'smem constant byte address 0x4 - core index']
  #allocation1 [shape = 'u32[144,128]{1,0:T(1,128)}', space=vmem, size = 0x12000, scoped, tag = 'internal scratch']
  %s0 = inlined_call_operand.hbm [shape: bf16[16,128], index: 0, kind: input, shape index: {}]
  %s1 = inlined_call_operand.hbm [shape: bf16[128,128], index: 1, kind: input, shape index: {}]
  %s2 = inlined_call_operand.vmem [shape: bf16[1,128], index: 2, kind: input, shape index: {}]
  %s3 = inlined_call_operand.hbm [shape: bf16[128,128], index: 3, kind: input, shape index: {}]
  %s4 = inlined_call_operand.vmem [shape: bf16[1,128], index: 4, kind: input, shape index: {}]
  %s5 = inlined_call_operand.hbm [shape: bf16[128,128], index: 5, kind: input, shape index: {}]
  %s6 = inlined_call_operand.vmem [shape: f32[1,128], index: 6, kind: input, shape index: {}]
  %s7 = inlined_call_operand.hbm [shape: f32[16,128], index: 7, kind: output, shape index: {}]
  %s8 = sld [smem:[#allocation0]]
  $region54: #{tpu_custom_call.1} parent=0
    _
  %s10 = ssub.s32 1, %s8
  %s11 = scalar_select 0, %s10, %s8
  $region1: #{tpu_custom_call.1} parent=0
    #allocation2 [shape = 'u8[4096]{0}', space=vmem, size = 0x1000, scoped, tag = 'input window, operand 0, single buffered']
    #allocation3 [shape = 's32[1]{0}', space=sflag, size = 0x4, scoped, tag = 'scoped memory for tpu_custom_call.1']
    #allocation4 [shape = 's32[1]{0}', space=sflag, size = 0x4, scoped, tag = 'scoped memory for tpu_custom_call.1']
    #allocation5 [shape = 'u8[32768]{0}', space=vmem, size = 0x8000, scoped, tag = 'input window, operand 1, single buffered']
    #allocation6 [shape = 's32[1]{0}', space=sflag, size = 0x4, scoped, tag = 'scoped memory for tpu_custom_call.1']
    #allocation7 [shape = 'u8[32768]{0}', space=vmem, size = 0x8000, scoped, tag = 'input window, operand 3, single buffered']
    #allocation8 [shape = 'u8[32768]{0}', space=vmem, size = 0x8000, scoped, tag = 'input window, operand 5, single buffered']
    #allocation9 [shape = 's32[1]{0}', space=sflag, size = 0x4, scoped, tag = 'scoped memory for tpu_custom_call.1']
    #allocation10 [shape = 'u8[8192]{0}', space=vmem, size = 0x2000, scoped, tag = 'output window, operand 0, single buffered']
    %12 = vsyncpa [#allocation3], 0
    %13 = vsyncpa [#allocation6], 0
    %14 = vsyncpa [#allocation9], 0
    %15 = vsyncpa [#allocation4], 0
    // Predicated region
    $region2: #{tpu_custom_call.1} parent=1 // pred_check
      _
    $region3: #{tpu_custom_call.1} parent=1 // pred_check_branch
      %17 = sbr.rel (0) target = $region5
    $region4: #{tpu_custom_call.1} parent=1 // pred_region
      %s19 = ssub.s32 128, 128
      %20 = vsyncadd [#allocation3], %s19
      %s21 = sshll.u32 [#allocation2], 4
      %s22 = int_to_ptr.vmem [resolvable:$true] %s21
      %27 = dma.hbm_to_vmem [thread:$0]  %s0, 128, %s22, [#allocation3], 64, 64, 4
    $region5: #{tpu_custom_call.1} parent=1 // pred_fallthru
      _
    // Predicated region
    $region6: #{tpu_custom_call.1} parent=1 // pred_check
      _
    $region7: #{tpu_custom_call.1} parent=1 // pred_check_branch
      %29 = sbr.rel (0) target = $region9
    $region8: #{tpu_custom_call.1} parent=1 // pred_region
      %s31 = ssub.s32 1024, 1024
      %32 = vsyncadd [#allocation6], %s31
      %s33 = sshll.u32 [#allocation5], 4
      %s34 = int_to_ptr.vmem [resolvable:$true] %s33
      %39 = dma.hbm_to_vmem [thread:$0]  %s1, 1024, %s34, [#allocation6], 64, 64, 4
    $region9: #{tpu_custom_call.1} parent=1 // pred_fallthru
      _
    // Predicated region
    $region10: #{tpu_custom_call.1} parent=1 // pred_check
      _
    $region11: #{tpu_custom_call.1} parent=1 // pred_check_branch
      %41 = sbr.rel (0) target = $region13
    $region12: #{tpu_custom_call.1} parent=1 // pred_region
      _
    $region13: #{tpu_custom_call.1} parent=1 // pred_fallthru
      _
    // Predicated region
    $region14: #{tpu_custom_call.1} parent=1 // pred_check
      _
    $region15: #{tpu_custom_call.1} parent=1 // pred_check_branch
      %43 = sbr.rel (0) target = $region17
    $region16: #{tpu_custom_call.1} parent=1 // pred_region
      %s45 = ssub.s32 1024, 1024
      %46 = vsyncadd [#allocation6], %s45
      %s47 = sshll.u32 [#allocation7], 4
      %s48 = int_to_ptr.vmem [resolvable:$true] %s47
      %53 = dma.hbm_to_vmem [thread:$0]  %s3, 1024, %s48, [#allocation6], 64, 64, 4
    $region17: #{tpu_custom_call.1} parent=1 // pred_fallthru
      _
    // Predicated region
    $region18: #{tpu_custom_call.1} parent=1 // pred_check
      _
    $region19: #{tpu_custom_call.1} parent=1 // pred_check_branch
      %55 = sbr.rel (0) target = $region21
    $region20: #{tpu_custom_call.1} parent=1 // pred_region
      _
    $region21: #{tpu_custom_call.1} parent=1 // pred_fallthru
      _
    // Predicated region
    $region22: #{tpu_custom_call.1} parent=1 // pred_check
      _
    $region23: #{tpu_custom_call.1} parent=1 // pred_check_branch
      %57 = sbr.rel (0) target = $region25
    $region24: #{tpu_custom_call.1} parent=1 // pred_region
      %s59 = ssub.s32 1024, 1024
      %60 = vsyncadd [#allocation9], %s59
      %s61 = sshll.u32 [#allocation8], 4
      %s62 = int_to_ptr.vmem [resolvable:$true] %s61
      %67 = dma.hbm_to_vmem [thread:$0]  %s5, 1024, %s62, [#allocation9], 64, 64, 4
    $region25: #{tpu_custom_call.1} parent=1 // pred_fallthru
      _
    // Predicated region
    $region26: #{tpu_custom_call.1} parent=1 // pred_check
      _
    $region27: #{tpu_custom_call.1} parent=1 // pred_check_branch
      %69 = sbr.rel (0) target = $region29
    $region28: #{tpu_custom_call.1} parent=1 // pred_region
      _
    $region29: #{tpu_custom_call.1} parent=1 // pred_fallthru
      _
    // Predicated region
    $region30: #{tpu_custom_call.1} parent=1 // pred_check
      _
    $region31: #{tpu_custom_call.1} parent=1 // pred_check_branch
      %71 = sbr.rel (0) target = $region33
    $region32: #{tpu_custom_call.1} parent=1 // pred_region
      %72 = dma.done [#allocation3], 128
    $region33: #{tpu_custom_call.1} parent=1 // pred_fallthru
      _
    // Predicated region
    $region34: #{tpu_custom_call.1} parent=1 // pred_check
      _
    $region35: #{tpu_custom_call.1} parent=1 // pred_check_branch
      %74 = sbr.rel (0) target = $region37
    $region36: #{tpu_custom_call.1} parent=1 // pred_region
      %75 = dma.done [#allocation6], 1024
    $region37: #{tpu_custom_call.1} parent=1 // pred_fallthru
      _
    // Predicated region
    $region38: #{tpu_custom_call.1} parent=1 // pred_check
      _
    $region39: #{tpu_custom_call.1} parent=1 // pred_check_branch
      %77 = sbr.rel (0) target = $region41
    $region40: #{tpu_custom_call.1} parent=1 // pred_region
      %78 = dma.done [#allocation6], 1024
    $region41: #{tpu_custom_call.1} parent=1 // pred_fallthru
      _
    // Predicated region
    $region42: #{tpu_custom_call.1} parent=1 // pred_check
      _
    $region43: #{tpu_custom_call.1} parent=1 // pred_check_branch
      %80 = sbr.rel (0) target = $region45
    $region44: #{tpu_custom_call.1} parent=1 // pred_region
      %81 = dma.done [#allocation9], 1024
    $region45: #{tpu_custom_call.1} parent=1 // pred_fallthru
      _
    %v83 = vld [vmem:[#allocation2] sm:$0xf]
    %v84 = vld [vmem:[#allocation2 + $0x4] sm:$0xf]
    %v85 = vld [vmem:[#allocation5] sm:$0xf]
    %v86 = vld [vmem:[#allocation5 + $0x4] sm:$0xf]
    %v87 = vld [vmem:[#allocation5 + $0x8] sm:$0xf]
    %v88 = vld [vmem:[#allocation5 + $0xc] sm:$0xf]
    %v89 = vld [vmem:[#allocation5 + $0x10] sm:$0xf]
    %v90 = vld [vmem:[#allocation5 + $0x14] sm:$0xf]
    %v91 = vld [vmem:[#allocation5 + $0x18] sm:$0xf]
    %v92 = vld [vmem:[#allocation5 + $0x1c] sm:$0xf]
    %v93 = vld [vmem:[#allocation5 + $0x20] sm:$0xf]
    %v94 = vld [vmem:[#allocation5 + $0x24] sm:$0xf]
    %v95 = vld [vmem:[#allocation5 + $0x28] sm:$0xf]
    %v96 = vld [vmem:[#allocation5 + $0x2c] sm:$0xf]
    %v97 = vld [vmem:[#allocation5 + $0x30] sm:$0xf]
    %v98 = vld [vmem:[#allocation5 + $0x34] sm:$0xf]
    %v99 = vld [vmem:[#allocation5 + $0x38] sm:$0xf]
    %v100 = vld [vmem:[#allocation5 + $0x3c] sm:$0xf]
    %v103 = vunpack.c.l.b16 %v83
    %v104 = vunpack.c.l.b16 %v84
    %v105 = vpack.c.b16 %v104, %v103
    %v123 = vunpack.c.l.b16 %v85
    %v124 = vunpack.c.l.b16 %v86
    %v125 = vunpack.c.l.b16 %v87
    %v126 = vunpack.c.l.b16 %v88
    %v127 = vunpack.c.l.b16 %v89
    %v128 = vunpack.c.l.b16 %v90
    %v129 = vunpack.c.l.b16 %v91
    %v130 = vunpack.c.l.b16 %v92
    %v131 = vunpack.c.l.b16 %v93
    %v132 = vunpack.c.l.b16 %v94
    %v133 = vunpack.c.l.b16 %v95
    %v134 = vunpack.c.l.b16 %v96
    %v135 = vunpack.c.l.b16 %v97
    %v136 = vunpack.c.l.b16 %v98
    %v137 = vunpack.c.l.b16 %v99
    %v138 = vunpack.c.l.b16 %v100
    %v139 = vpack.c.b16 %v124, %v123
    %v140 = vpack.c.b16 %v126, %v125
    %v141 = vpack.c.b16 %v128, %v127
    %v142 = vpack.c.b16 %v130, %v129
    %v143 = vpack.c.b16 %v132, %v131
    %v144 = vpack.c.b16 %v134, %v133
    %v145 = vpack.c.b16 %v136, %v135
    %v146 = vpack.c.b16 %v138, %v137
    %155 = vmatprep.subr.bf16.mxu0 0
    %156 = vmatpush1.bf16.msra.mxu0 %v139
    %157 = vmatprep.subr.bf16.mxu0 0
    %158 = vmatpush1.bf16.msra.mxu0 %v140
    %159 = vmatprep.subr.bf16.mxu0 0
    %160 = vmatpush1.bf16.msra.mxu0 %v141
    %161 = vmatprep.subr.bf16.mxu0 0
    %162 = vmatpush1.bf16.msra.mxu0 %v142
    %163 = vmatprep.subr.bf16.mxu0 0
    %164 = vmatpush1.bf16.msra.mxu0 %v143
    %165 = vmatprep.subr.bf16.mxu0 0
    %166 = vmatpush1.bf16.msra.mxu0 %v144
    %167 = vmatprep.subr.bf16.mxu0 0
    %168 = vmatpush1.bf16.msra.mxu0 %v145
    %169 = vmatprep.subr.bf16.mxu0 0
    %170 = vmatpush1.bf16.msra.mxu0 %v146
    %171 = vmatprep.subr.bf16.mxu0 0
    %172 = vmatpush1.bf16.msra.mxu0 0
    %173 = vmatprep.subr.bf16.mxu0 0
    %174 = vmatpush1.bf16.msra.mxu0 0
    %175 = vmatprep.subr.bf16.mxu0 0
    %176 = vmatpush1.bf16.msra.mxu0 0
    %177 = vmatprep.subr.bf16.mxu0 0
    %178 = vmatpush1.bf16.msra.mxu0 0
    %179 = vmatprep.subr.bf16.mxu0 0
    %180 = vmatpush1.bf16.msra.mxu0 0
    %181 = vmatprep.subr.bf16.mxu0 0
    %182 = vmatpush1.bf16.msra.mxu0 0
    %183 = vmatprep.subr.bf16.mxu0 0
    %184 = vmatpush1.bf16.msra.mxu0 0
    %185 = vmatprep.subr.bf16.mxu0 0
    %186 = vmatpush1.bf16.msra.mxu0 0
    %187 = vmatprep.mubr.bf16.mxu0 0
    %188 = vmatmul.mubr.bf16.gmra.mrb[0].mxu0 %v105
    %v189 = vpop.f32.mrb[0].mxu0
    %v190 = vadd.f32 0.0, %v189
    %v191 = vpop.f32.mrb[0].mxu0
    %v192 = vpop.f32.mrb[0].mxu0
    %v193 = vadd.f32 0.0, %v192
    %v194 = vpop.f32.mrb[0].mxu0
    %195 = vdwg.mxu0
    %v196 = vpack.c.bf16 %v193, %v190
    %v197 = vld [vmem:[%s2] sm:$0x1]
    %v199 = vpack.i.b16 %v197, %v197
    %v201 = vlaneseq
    %v202 = vshrl.u32 %v201, 7
    %v203 = vsub.s32 0, %v202
    %v204 = vrot.slane %v199, %v203
    %v205 = vadd.bf16 %v196, %v204
    %v206 = vmax.bf16 %v205, 0
    %v207 = vld [vmem:[#allocation7] sm:$0xf]
    %v208 = vld [vmem:[#allocation7 + $0x4] sm:$0xf]
    %v209 = vld [vmem:[#allocation7 + $0x8] sm:$0xf]
    %v210 = vld [vmem:[#allocation7 + $0xc] sm:$0xf]
    %v211 = vld [vmem:[#allocation7 + $0x10] sm:$0xf]
    %v212 = vld [vmem:[#allocation7 + $0x14] sm:$0xf]
    %v213 = vld [vmem:[#allocation7 + $0x18] sm:$0xf]
    %v214 = vld [vmem:[#allocation7 + $0x1c] sm:$0xf]
    %v215 = vld [vmem:[#allocation7 + $0x20] sm:$0xf]
    %v216 = vld [vmem:[#allocation7 + $0x24] sm:$0xf]
    %v217 = vld [vmem:[#allocation7 + $0x28] sm:$0xf]
    %v218 = vld [vmem:[#allocation7 + $0x2c] sm:$0xf]
    %v219 = vld [vmem:[#allocation7 + $0x30] sm:$0xf]
    %v220 = vld [vmem:[#allocation7 + $0x34] sm:$0xf]
    %v221 = vld [vmem:[#allocation7 + $0x38] sm:$0xf]
    %v222 = vld [vmem:[#allocation7 + $0x3c] sm:$0xf]
    %v239 = vunpack.c.l.b16 %v207
    %v240 = vunpack.c.l.b16 %v208
    %v241 = vunpack.c.l.b16 %v209
    %v242 = vunpack.c.l.b16 %v210
    %v243 = vunpack.c.l.b16 %v211
    %v244 = vunpack.c.l.b16 %v212
    %v245 = vunpack.c.l.b16 %v213
    %v246 = vunpack.c.l.b16 %v214
    %v247 = vunpack.c.l.b16 %v215
    %v248 = vunpack.c.l.b16 %v216
    %v249 = vunpack.c.l.b16 %v217
    %v250 = vunpack.c.l.b16 %v218
    %v251 = vunpack.c.l.b16 %v219
    %v252 = vunpack.c.l.b16 %v220
    %v253 = vunpack.c.l.b16 %v221
    %v254 = vunpack.c.l.b16 %v222
    %v255 = vpack.c.b16 %v240, %v239
    %v256 = vpack.c.b16 %v242, %v241
    %v257 = vpack.c.b16 %v244, %v243
    %v258 = vpack.c.b16 %v246, %v245
    %v259 = vpack.c.b16 %v248, %v247
    %v260 = vpack.c.b16 %v250, %v249
    %v261 = vpack.c.b16 %v252, %v251
    %v262 = vpack.c.b16 %v254, %v253
    %271 = vmatprep.subr.bf16.mxu0 0
    %272 = vmatpush1.bf16.msra.mxu0 %v255
    %273 = vmatprep.subr.bf16.mxu0 0
    %274 = vmatpush1.bf16.msra.mxu0 %v256
    %275 = vmatprep.subr.bf16.mxu0 0
    %276 = vmatpush1.bf16.msra.mxu0 %v257
    %277 = vmatprep.subr.bf16.mxu0 0
    %278 = vmatpush1.bf16.msra.mxu0 %v258
    %279 = vmatprep.subr.bf16.mxu0 0
    %280 = vmatpush1.bf16.msra.mxu0 %v259
    %281 = vmatprep.subr.bf16.mxu0 0
    %282 = vmatpush1.bf16.msra.mxu0 %v260
    %283 = vmatprep.subr.bf16.mxu0 0
    %284 = vmatpush1.bf16.msra.mxu0 %v261
    %285 = vmatprep.subr.bf16.mxu0 0
    %286 = vmatpush1.bf16.msra.mxu0 %v262
    %287 = vmatprep.subr.bf16.mxu0 0
    %288 = vmatpush1.bf16.msra.mxu0 0
    %289 = vmatprep.subr.bf16.mxu0 0
    %290 = vmatpush1.bf16.msra.mxu0 0
    %291 = vmatprep.subr.bf16.mxu0 0
    %292 = vmatpush1.bf16.msra.mxu0 0
    %293 = vmatprep.subr.bf16.mxu0 0
    %294 = vmatpush1.bf16.msra.mxu0 0
    %295 = vmatprep.subr.bf16.mxu0 0
    %296 = vmatpush1.bf16.msra.mxu0 0
    %297 = vmatprep.subr.bf16.mxu0 0
    %298 = vmatpush1.bf16.msra.mxu0 0
    %299 = vmatprep.subr.bf16.mxu0 0
    %300 = vmatpush1.bf16.msra.mxu0 0
    %301 = vmatprep.subr.bf16.mxu0 0
    %302 = vmatpush1.bf16.msra.mxu0 0
    %303 = vmatprep.mubr.bf16.mxu0 0
    %304 = vmatmul.mubr.bf16.gmra.mrb[0].mxu0 %v206
    %v305 = vpop.f32.mrb[0].mxu0
    %v306 = vadd.f32 0.0, %v305
    %v307 = vpop.f32.mrb[0].mxu0
    %v308 = vpop.f32.mrb[0].mxu0
    %v309 = vadd.f32 0.0, %v308
    %v310 = vpop.f32.mrb[0].mxu0
    %311 = vdwg.mxu0
    %v312 = vpack.c.bf16 %v309, %v306
    %v313 = vld [vmem:[%s4] sm:$0x1]
    %v315 = vpack.i.b16 %v313, %v313
    %v317 = vlaneseq
    %v318 = vshrl.u32 %v317, 7
    %v319 = vsub.s32 0, %v318
    %v320 = vrot.slane %v315, %v319
    %v321 = vadd.bf16 %v312, %v320
    %v322 = vmax.bf16 %v321, 0
    %v323 = vld [vmem:[#allocation8] sm:$0xf]
    %v324 = vld [vmem:[#allocation8 + $0x4] sm:$0xf]
    %v325 = vld [vmem:[#allocation8 + $0x8] sm:$0xf]
    %v326 = vld [vmem:[#allocation8 + $0xc] sm:$0xf]
    %v327 = vld [vmem:[#allocation8 + $0x10] sm:$0xf]
    %v328 = vld [vmem:[#allocation8 + $0x14] sm:$0xf]
    %v329 = vld [vmem:[#allocation8 + $0x18] sm:$0xf]
    %v330 = vld [vmem:[#allocation8 + $0x1c] sm:$0xf]
    %v331 = vld [vmem:[#allocation8 + $0x20] sm:$0xf]
    %v332 = vld [vmem:[#allocation8 + $0x24] sm:$0xf]
    %v333 = vld [vmem:[#allocation8 + $0x28] sm:$0xf]
    %v334 = vld [vmem:[#allocation8 + $0x2c] sm:$0xf]
    %v335 = vld [vmem:[#allocation8 + $0x30] sm:$0xf]
    %v336 = vld [vmem:[#allocation8 + $0x34] sm:$0xf]
    %v337 = vld [vmem:[#allocation8 + $0x38] sm:$0xf]
    %v338 = vld [vmem:[#allocation8 + $0x3c] sm:$0xf]
    %v339 = vld [vmem:[%s6] sm:$0x1]
    %v341 = vlaneseq
    %v342 = vshrl.u32 %v341, 7
    %v343 = vsub.s32 0, %v342
    %v344 = vrot.slane %v339, %v343
    %v362 = vunpack.c.l.b16 %v323
    %v363 = vunpack.c.l.b16 %v324
    %v364 = vunpack.c.l.b16 %v325
    %v365 = vunpack.c.l.b16 %v326
    %v366 = vunpack.c.l.b16 %v327
    %v367 = vunpack.c.l.b16 %v328
    %v368 = vunpack.c.l.b16 %v329
    %v369 = vunpack.c.l.b16 %v330
    %v370 = vunpack.c.l.b16 %v331
    %v371 = vunpack.c.l.b16 %v332
    %v372 = vunpack.c.l.b16 %v333
    %v373 = vunpack.c.l.b16 %v334
    %v374 = vunpack.c.l.b16 %v335
    %v375 = vunpack.c.l.b16 %v336
    %v376 = vunpack.c.l.b16 %v337
    %v377 = vunpack.c.l.b16 %v338
    %v378 = vpack.c.b16 %v363, %v362
    %v379 = vpack.c.b16 %v365, %v364
    %v380 = vpack.c.b16 %v367, %v366
    %v381 = vpack.c.b16 %v369, %v368
    %v382 = vpack.c.b16 %v371, %v370
    %v383 = vpack.c.b16 %v373, %v372
    %v384 = vpack.c.b16 %v375, %v374
    %v385 = vpack.c.b16 %v377, %v376
    %394 = vmatprep.subr.bf16.mxu0 0
    %395 = vmatpush1.bf16.msra.mxu0 %v378
    %396 = vmatprep.subr.bf16.mxu0 0
    %397 = vmatpush1.bf16.msra.mxu0 %v379
    %398 = vmatprep.subr.bf16.mxu0 0
    %399 = vmatpush1.bf16.msra.mxu0 %v380
    %400 = vmatprep.subr.bf16.mxu0 0
    %401 = vmatpush1.bf16.msra.mxu0 %v381
    %402 = vmatprep.subr.bf16.mxu0 0
    %403 = vmatpush1.bf16.msra.mxu0 %v382
    %404 = vmatprep.subr.bf16.mxu0 0
    %405 = vmatpush1.bf16.msra.mxu0 %v383
    %406 = vmatprep.subr.bf16.mxu0 0
    %407 = vmatpush1.bf16.msra.mxu0 %v384
    %408 = vmatprep.subr.bf16.mxu0 0
    %409 = vmatpush1.bf16.msra.mxu0 %v385
    %410 = vmatprep.subr.bf16.mxu0 0
    %411 = vmatpush1.bf16.msra.mxu0 0
    %412 = vmatprep.subr.bf16.mxu0 0
    %413 = vmatpush1.bf16.msra.mxu0 0
    %414 = vmatprep.subr.bf16.mxu0 0
    %415 = vmatpush1.bf16.msra.mxu0 0
    %416 = vmatprep.subr.bf16.mxu0 0
    %417 = vmatpush1.bf16.msra.mxu0 0
    %418 = vmatprep.subr.bf16.mxu0 0
    %419 = vmatpush1.bf16.msra.mxu0 0
    %420 = vmatprep.subr.bf16.mxu0 0
    %421 = vmatpush1.bf16.msra.mxu0 0
    %422 = vmatprep.subr.bf16.mxu0 0
    %423 = vmatpush1.bf16.msra.mxu0 0
    %424 = vmatprep.subr.bf16.mxu0 0
    %425 = vmatpush1.bf16.msra.mxu0 0
    %426 = vmatprep.mubr.bf16.mxu0 0
    %427 = vmatmul.mubr.bf16.gmra.mrb[0].mxu0 %v322
    %v428 = vpop.f32.mrb[0].mxu0
    %v429 = vadd.f32 %v344, %v428
    %v430 = vpop.f32.mrb[0].mxu0
    %v431 = vpop.f32.mrb[0].mxu0
    %v432 = vadd.f32 %v344, %v431
    %v433 = vpop.f32.mrb[0].mxu0
    %434 = vdwg.mxu0
    %435 = vst [vmem:[#allocation10] sm:$0xff] %v429
    %436 = vst [vmem:[#allocation10 + $0x8] sm:$0xff] %v432
    // Predicated region
    $region46: #{tpu_custom_call.1} parent=1 // pred_check
      _
    $region47: #{tpu_custom_call.1} parent=1 // pred_check_branch
      %438 = sbr.rel (0) target = $region49
    $region48: #{tpu_custom_call.1} parent=1 // pred_region
      %s440 = ssub.s32 256, 256
      %441 = vsyncadd [#allocation4], %s440
      %s442 = sshll.u32 [#allocation10], 4
      %s443 = int_to_ptr.vmem [resolvable:$true] %s442
      %448 = dma.vmem_to_hbm [thread:$0]  %s443, 256, %s7, [#allocation4], 128, 128, 8
    $region49: #{tpu_custom_call.1} parent=1 // pred_fallthru
      _
    // Predicated region
    $region50: #{tpu_custom_call.1} parent=1 // pred_check
      _
    $region51: #{tpu_custom_call.1} parent=1 // pred_check_branch
      %450 = sbr.rel (0) target = $region53
    $region52: #{tpu_custom_call.1} parent=1 // pred_region
      %451 = dma.done [#allocation4], 256
    $region53: #{tpu_custom_call.1} parent=1 // pred_fallthru
      _
    %452 = vsyncpa [#allocation3], 1
    %453 = vsyncpa [#allocation6], 1
    %454 = vsyncpa [#allocation9], 1
    %455 = vsyncpa [#allocation4], 1

</llo_original>
